<compile_context>
chip_gen: v6e
topology: v6e:2x2x1
jax: 0.10.0
libtpu: 0.0.40
codegen_flags: <defaults>
</compile_context>

<pallas_src>
import jax
import jax.numpy as jnp
from jax.experimental import pallas as pl
from jax.experimental.pallas import tpu as pltpu


def _projector_kernel(x_ref, w_ref, b_ref, o_ref):
    # x_ref: (tm, H_in) compute dtype; w_ref: (H_in, tn) compute dtype
    # b_ref: (1, tn) f32;             o_ref: (tm, tn) out dtype
    acc = jnp.dot(x_ref[...], w_ref[...], preferred_element_type=jnp.float32)
    acc = acc + b_ref[...].astype(jnp.float32)
    o_ref[...] = acc.astype(o_ref.dtype)


def _round_up(x, m):
    return ((x + m - 1) // m) * m


def _choose_tn(P, tn_max):
    # Full extent if small or not lane-aligned; otherwise the largest
    # multiple-of-128 divisor of P that fits under tn_max.
    if P <= tn_max or P % 128 != 0:
        return P
    for cand in range(tn_max, 127, -128):
        if P % cand == 0:
            return cand
    return P


def bge_gemma2_multimodal_projector(
    image_features,          # (B, S, H_in)
    weight,                  # (P, H_in)  -- PyTorch nn.Linear layout
    bias,                    # (P,)
    *,
    tm=256,                  # row tile (tunable; multiple of 16)
    tn_max=2048,             # max projection-dim tile (multiple of 128)
    compute_dtype=jnp.bfloat16,
    vmem_limit_bytes=48 * 1024 * 1024,
):
    B, S, H_in = image_features.shape
    P = weight.shape[0]
    M = B * S
    out_dtype = image_features.dtype

    # Row tile: bf16-sublane-safe (multiple of 16), never larger than needed.
    tm_eff = _round_up(min(tm, _round_up(M, 16)), 16)
    M_pad = _round_up(M, tm_eff)
    tn = _choose_tn(P, tn_max)
    num_m = M_pad // tm_eff
    num_n = P // tn

    x2d = image_features.reshape(M, H_in).astype(compute_dtype)
    if M_pad != M:
        x2d = jnp.pad(x2d, ((0, M_pad - M), (0, 0)))
    # TODO(synk): store the projector weight pre-transposed (H_in, P) in params
    # to avoid this per-call transpose of a multi-MB weight.
    w_t = weight.T.astype(compute_dtype)
    b2d = bias.reshape(1, P).astype(jnp.float32)

    cost = pl.CostEstimate(
        flops=2 * M_pad * H_in * P,
        transcendentals=0,
        bytes_accessed=(
            x2d.size * x2d.dtype.itemsize
            + w_t.size * w_t.dtype.itemsize * num_m   # weight streamed per M tile
            + b2d.size * 4
            + M_pad * P * jnp.dtype(out_dtype).itemsize
        ),
    )

    out2d = pl.pallas_call(
        _projector_kernel,
        out_shape=jax.ShapeDtypeStruct((M_pad, P), out_dtype),
        grid_spec=pltpu.PrefetchScalarGridSpec(
            num_scalar_prefetch=0,
            grid=(num_m, num_n),
            in_specs=[
                pl.BlockSpec((tm_eff, H_in), lambda i, j: (i, 0)),  # row tile of x
                pl.BlockSpec((H_in, tn), lambda i, j: (0, j)),      # weight column tile
                pl.BlockSpec((1, tn), lambda i, j: (0, j)),         # bias tile
            ],
            out_specs=pl.BlockSpec((tm_eff, tn), lambda i, j: (i, j)),
        ),
        compiler_params=pltpu.CompilerParams(
            dimension_semantics=("parallel", "parallel"),
            vmem_limit_bytes=vmem_limit_bytes,
        ),
        cost_estimate=cost,
    )(x2d, w_t, b2d)

    return out2d[:M].reshape(B, S, P)


if __name__ == "__main__":
    key = jax.random.PRNGKey(0)
    keys = jax.random.split(key, 6)

    def run_case(B, S, H_IN, PROJ, ks):
        k_x, k_w, k_b = ks
        x = jax.random.normal(k_x, (B, S, H_IN), dtype=jnp.float32)
        # Deterministic "Linear" parameters (PyTorch layout: (out, in)).
        w = jax.random.normal(k_w, (PROJ, H_IN), dtype=jnp.float32) * 0.02
        b = jax.random.normal(k_b, (PROJ,), dtype=jnp.float32) * 0.02

        out = jax.block_until_ready(bge_gemma2_multimodal_projector(x, w, b))
        ref = x @ w.T + b
        assert out.shape == (B, S, PROJ)
        # bf16 hot path with f32 accumulation -> loose-but-tight-enough tolerance.
        assert jnp.allclose(out, ref, atol=2e-2, rtol=2e-2), float(
            jnp.max(jnp.abs(out - ref))
        )

    # Small synthetic config from the module spec: vision_hidden=32, projection_dim=64.
    run_case(2, 8, 32, 64, keys[0:3])
    # Second tiny case: exercises row padding (M=15) and a lane-dense 128-multiple output.
    run_case(3, 5, 128, 256, keys[3:6])

    print("KERNEL_OK")
</pallas_src>

<mosaic_0001>
module attributes {stable_mosaic.version = 11 : i64} {
  func.func @_projector_kernel(%arg0: i32, %arg1: i32, %arg2: memref<16x32xbf16, #tpu.memory_space<vmem>>, %arg3: memref<32x64xbf16, #tpu.memory_space<vmem>>, %arg4: memref<1x64xf32, #tpu.memory_space<vmem>>, %arg5: memref<16x64xf32, #tpu.memory_space<vmem>>) attributes {dimension_semantics = [#tpu.dimension_semantics<parallel>, #tpu.dimension_semantics<parallel>], iteration_bounds = array<i64: 1, 1>, scalar_prefetch = 0 : i64, scratch_operands = 0 : i64, tpu.core_type = #tpu.core_type<tc>, window_params = [{transform_indices = @transform_0, window_bounds = array<i64: 16, 32>}, {transform_indices = @transform_1, window_bounds = array<i64: 32, 64>}, {transform_indices = @transform_2, window_bounds = array<i64: 1, 64>}, {transform_indices = @transform_3, window_bounds = array<i64: 16, 64>}]} {
    %c0 = arith.constant 0 : index
    %c0_0 = arith.constant 0 : index
    %0 = vector.load %arg2[%c0, %c0_0] : memref<16x32xbf16, #tpu.memory_space<vmem>>, vector<16x32xbf16>
    %c0_1 = arith.constant 0 : index
    %c0_2 = arith.constant 0 : index
    %1 = vector.load %arg3[%c0_1, %c0_2] : memref<32x64xbf16, #tpu.memory_space<vmem>>, vector<32x64xbf16>
    %cst = arith.constant dense<0.000000e+00> : vector<16x64xf32>
    %2 = tpu.matmul %0, %1, %cst {dimension_numbers = #tpu.dot_dimension_numbers<[1], [0], [0], [1], [0, 0, 1, 1], [], []>} : vector<16x32xbf16>, vector<32x64xbf16>, vector<16x64xf32> -> vector<16x64xf32>
    %c0_3 = arith.constant 0 : index
    %c0_4 = arith.constant 0 : index
    %3 = vector.load %arg4[%c0_3, %c0_4] : memref<1x64xf32, #tpu.memory_space<vmem>>, vector<1x64xf32>
    %4 = vector.broadcast %3 : vector<1x64xf32> to vector<16x64xf32>
    %5 = arith.addf %2, %4 : vector<16x64xf32>
    %c0_5 = arith.constant 0 : index
    %c0_6 = arith.constant 0 : index
    %6 = vector.load %arg5[%c0_5, %c0_6] : memref<16x64xf32, #tpu.memory_space<vmem>>, vector<16x64xf32>
    tpu.vector_store %arg5[%c0_5, %c0_6], %5 {strides = array<i32>} : memref<16x64xf32, #tpu.memory_space<vmem>>, vector<16x64xf32>,
    return
  }
  func.func @transform_0(%arg0: i32, %arg1: i32) -> (i32, i32) {
    %c0_i32 = arith.constant 0 : i32
    %c0_i32_0 = arith.constant 0 : i32
    return %arg0, %c0_i32 : i32, i32
  }
  func.func @transform_1(%arg0: i32, %arg1: i32) -> (i32, i32) {
    %c0_i32 = arith.constant 0 : i32
    %c0_i32_0 = arith.constant 0 : i32
    return %c0_i32, %arg1 : i32, i32
  }
  func.func @transform_2(%arg0: i32, %arg1: i32) -> (i32, i32) {
    %c0_i32 = arith.constant 0 : i32
    %c0_i32_0 = arith.constant 0 : i32
    return %c0_i32, %arg1 : i32, i32
  }
  func.func @transform_3(%arg0: i32, %arg1: i32) -> (i32, i32) {
    %c0_i32 = arith.constant 0 : i32
    return %arg0, %arg1 : i32, i32
  }
}

</mosaic_0001>

<llo_original>
// kernel: tpu_custom_call.1
$region0: #{tpu_custom_call.1}
  #allocation0 [shape = 'u32[]', space=smem, size = 0x4, offset = 0x4, fixed_abs, tag = 'smem constant byte address 0x4 - core index']
  #allocation1 [shape = 'u32[144,128]{1,0:T(1,128)}', space=vmem, size = 0x12000, scoped, tag = 'internal scratch']
  %s0 = inlined_call_operand.hbm [shape: bf16[16,32], index: 0, kind: input, shape index: {}]
  %s1 = inlined_call_operand.hbm [shape: bf16[32,64], index: 1, kind: input, shape index: {}]
  %s2 = inlined_call_operand.vmem [shape: f32[1,64], index: 2, kind: input, shape index: {}]
  %s3 = inlined_call_operand.hbm [shape: f32[16,64], index: 3, kind: output, shape index: {}]
  %s4 = sld [smem:[#allocation0]]
  $region30: #{tpu_custom_call.1} parent=0
    _
  %s6 = ssub.s32 1, %s4
  %s7 = scalar_select 0, %s6, %s4
  $region1: #{tpu_custom_call.1} parent=0
    #allocation2 [shape = 'u8[4096]{0}', space=vmem, size = 0x1000, scoped, tag = 'input window, operand 0, single buffered']
    #allocation3 [shape = 's32[1]{0}', space=sflag, size = 0x4, scoped, tag = 'scoped memory for tpu_custom_call.1']
    #allocation4 [shape = 's32[1]{0}', space=sflag, size = 0x4, scoped, tag = 'scoped memory for tpu_custom_call.1']
    #allocation5 [shape = 'u8[8192]{0}', space=vmem, size = 0x2000, scoped, tag = 'input window, operand 1, single buffered']
    #allocation6 [shape = 's32[1]{0}', space=sflag, size = 0x4, scoped, tag = 'scoped memory for tpu_custom_call.1']
    #allocation7 [shape = 'u8[8192]{0}', space=vmem, size = 0x2000, scoped, tag = 'output window, operand 0, single buffered']
    %8 = vsyncpa [#allocation3], 0
    %9 = vsyncpa [#allocation6], 0
    %10 = vsyncpa [#allocation4], 0
    // Predicated region
    $region2: #{tpu_custom_call.1} parent=1 // pred_check
      _
    $region3: #{tpu_custom_call.1} parent=1 // pred_check_branch
      %12 = sbr.rel (0) target = $region5
    $region4: #{tpu_custom_call.1} parent=1 // pred_region
      %s14 = ssub.s32 128, 128
      %15 = vsyncadd [#allocation3], %s14
      %s16 = sshll.u32 [#allocation2], 4
      %s17 = int_to_ptr.vmem [resolvable:$true] %s16
      %22 = dma.hbm_to_vmem [thread:$0]  %s0, 128, %s17, [#allocation3], 64, 64, 4
    $region5: #{tpu_custom_call.1} parent=1 // pred_fallthru
      _
    // Predicated region
    $region6: #{tpu_custom_call.1} parent=1 // pred_check
      _
    $region7: #{tpu_custom_call.1} parent=1 // pred_check_branch
      %24 = sbr.rel (0) target = $region9
    $region8: #{tpu_custom_call.1} parent=1 // pred_region
      %s26 = ssub.s32 256, 256
      %27 = vsyncadd [#allocation6], %s26
      %s28 = sshll.u32 [#allocation5], 4
      %s29 = int_to_ptr.vmem [resolvable:$true] %s28
      %34 = dma.hbm_to_vmem [thread:$0]  %s1, 256, %s29, [#allocation6], 64, 64, 4
    $region9: #{tpu_custom_call.1} parent=1 // pred_fallthru
      _
    // Predicated region
    $region10: #{tpu_custom_call.1} parent=1 // pred_check
      _
    $region11: #{tpu_custom_call.1} parent=1 // pred_check_branch
      %36 = sbr.rel (0) target = $region13
    $region12: #{tpu_custom_call.1} parent=1 // pred_region
      _
    $region13: #{tpu_custom_call.1} parent=1 // pred_fallthru
      _
    // Predicated region
    $region14: #{tpu_custom_call.1} parent=1 // pred_check
      _
    $region15: #{tpu_custom_call.1} parent=1 // pred_check_branch
      %38 = sbr.rel (0) target = $region17
    $region16: #{tpu_custom_call.1} parent=1 // pred_region
      %39 = dma.done [#allocation3], 128
    $region17: #{tpu_custom_call.1} parent=1 // pred_fallthru
      _
    // Predicated region
    $region18: #{tpu_custom_call.1} parent=1 // pred_check
      _
    $region19: #{tpu_custom_call.1} parent=1 // pred_check_branch
      %41 = sbr.rel (0) target = $region21
    $region20: #{tpu_custom_call.1} parent=1 // pred_region
      %42 = dma.done [#allocation6], 256
    $region21: #{tpu_custom_call.1} parent=1 // pred_fallthru
      _
    %v44 = vld [vmem:[#allocation2] sm:$0xf]
    %v45 = vld [vmem:[#allocation2 + $0x4] sm:$0xf]
    %v46 = vld [vmem:[#allocation5] sm:$0xf]
    %v47 = vld [vmem:[#allocation5 + $0x4] sm:$0xf]
    %v48 = vld [vmem:[#allocation5 + $0x8] sm:$0xf]
    %v49 = vld [vmem:[#allocation5 + $0xc] sm:$0xf]
    %v50 = vld [vmem:[%s2] sm:$0x1]
    %v52 = vlaneseq
    %v53 = vshrl.u32 %v52, 7
    %v54 = vsub.s32 0, %v53
    %v55 = vrot.slane %v50, %v54
    %v59 = vunpack.c.l.b16 %v44
    %v60 = vunpack.c.l.b16 %v45
    %v61 = vpack.c.b16 %v60, %v59
    %v66 = vunpack.c.l.b16 %v46
    %v67 = vunpack.c.l.b16 %v47
    %v68 = vunpack.c.l.b16 %v48
    %v69 = vunpack.c.l.b16 %v49
    %v70 = vpack.c.b16 %v67, %v66
    %v71 = vpack.c.b16 %v69, %v68
    %vm74 = vcmask 261120
    %v76 = vsel %vm74, %v61, 0
    %78 = vmatprep.subr.bf16.mxu0 0
    %79 = vmatpush1.bf16.msra.mxu0 0
    %80 = vmatprep.subr.bf16.mxu0 0
    %81 = vmatpush1.bf16.msra.mxu0 0
    %82 = vmatprep.subr.bf16.mxu0 0
    %83 = vmatpush1.bf16.msra.mxu0 0
    %84 = vmatprep.subr.bf16.mxu0 0
    %85 = vmatpush1.bf16.msra.mxu0 0
    %86 = vmatprep.subr.bf16.mxu0 0
    %87 = vmatpush1.bf16.msra.mxu0 0
    %88 = vmatprep.subr.bf16.mxu0 0
    %89 = vmatpush1.bf16.msra.mxu0 0
    %90 = vmatprep.subr.bf16.mxu0 0
    %91 = vmatpush1.bf16.msra.mxu0 %v71
    %92 = vmatprep.subr.bf16.mxu0 0
    %93 = vmatpush1.bf16.msra.mxu0 %v70
    %94 = vmatprep.subr.bf16.mxu0 0
    %95 = vmatpush2.bf16.msra.mxu0 0
    %96 = vmatprep.subr.bf16.mxu0 0
    %97 = vmatpush2.bf16.msra.mxu0 0
    %98 = vmatprep.subr.bf16.mxu0 0
    %99 = vmatpush2.bf16.msra.mxu0 0
    %100 = vmatprep.subr.bf16.mxu0 0
    %101 = vmatpush2.bf16.msra.mxu0 0
    %102 = vmatprep.subr.bf16.mxu0 0
    %103 = vmatpush2.bf16.msra.mxu0 0
    %104 = vmatprep.subr.bf16.mxu0 0
    %105 = vmatpush2.bf16.msra.mxu0 0
    %106 = vmatprep.subr.bf16.mxu0 0
    %107 = vmatpush2.bf16.msra.mxu0 0
    %108 = vmatprep.subr.bf16.mxu0 0
    %109 = vmatpush2.bf16.msra.mxu0 0
    %110 = vmatprep.mubr.bf16.mxu0 0
    %111 = vmatmul.mubr.bf16.gmra.mxu0 %v76
    %v112 = vpop.f32.mrf.mxu0
    %v113 = vadd.f32 %v55, %v112
    %v114 = vpop.f32.mrf.mxu0
    %v115 = vpop.f32.mrf.mxu0
    %v116 = vadd.f32 %v55, %v115
    %v117 = vpop.f32.mrf.mxu0
    %118 = vdwg.mxu0
    %vm119 = vcmask 523264
    %120 = vst.msk [vmem:[#allocation7] sm:$0xff] %vm119, %v113
    %121 = vst.msk [vmem:[#allocation7 + $0x8] sm:$0xff] %vm119, %v116
    // Predicated region
    $region22: #{tpu_custom_call.1} parent=1 // pred_check
      _
    $region23: #{tpu_custom_call.1} parent=1 // pred_check_branch
      %123 = sbr.rel (0) target = $region25
    $region24: #{tpu_custom_call.1} parent=1 // pred_region
      %s125 = ssub.s32 256, 256
      %126 = vsyncadd [#allocation4], %s125
      %s127 = sshll.u32 [#allocation7], 4
      %s128 = int_to_ptr.vmem [resolvable:$true] %s127
      %133 = dma.vmem_to_hbm [thread:$0]  %s128, 256, %s3, [#allocation4], 128, 128, 8
    $region25: #{tpu_custom_call.1} parent=1 // pred_fallthru
      _
    // Predicated region
    $region26: #{tpu_custom_call.1} parent=1 // pred_check
      _
    $region27: #{tpu_custom_call.1} parent=1 // pred_check_branch
      %135 = sbr.rel (0) target = $region29
    $region28: #{tpu_custom_call.1} parent=1 // pred_region
      %136 = dma.done [#allocation4], 256
    $region29: #{tpu_custom_call.1} parent=1 // pred_fallthru
      _
    %137 = vsyncpa [#allocation3], 1
    %138 = vsyncpa [#allocation6], 1
    %139 = vsyncpa [#allocation4], 1

</llo_original>
